<compile_context>
chip_gen: v5e
topology: v5e:2x2
jax: 0.10.0
libtpu: 0.0.40
codegen_flags: <defaults>
</compile_context>

<pallas_src>
import jax
import jax.numpy as jnp
from jax import lax
from jax.experimental import pallas as pl
from jax.experimental.pallas import tpu as pltpu

_LANES = 128
_MAX_TILE_ROWS = 1024  # packed (128-lane) rows per grid step


def _make_nll_kernel(groups, c_pad, total_rows, tile_rows):
    """Kernel over a (tile_rows, 128) packed pred block + (tile_rows, groups) targets."""

    def kernel(pred_ref, tgt_ref, out_ref):
        pred = pred_ref[...].astype(jnp.float32)          # (TR, 128), in-kernel upcast
        tgt = tgt_ref[...]                                # (TR, G) int32
        tr = pred.shape[0]

        lane = lax.broadcasted_iota(jnp.int32, (tr, _LANES), 1)
        # pred row (r*G + g) lives in lanes [g*c_pad, (g+1)*c_pad); its target
        # class t selects lane g*c_pad + t.  Build the one-hot mask per group.
        mask = lane == tgt[:, 0:1]
        for g in range(1, groups):
            mask = mask | (lane == (tgt[:, g : g + 1] + g * c_pad))

        # Ragged last tile: mask out packed rows beyond the real extent.
        if total_rows % tile_rows != 0:
            row = (
                lax.broadcasted_iota(jnp.int32, (tr, _LANES), 0)
                + pl.program_id(0) * tile_rows
            )
            mask = mask & (row < total_rows)

        picked = jnp.where(mask, pred, 0.0)
        # Per-lane partial sums -> lane-dense (1, 128) output row for this tile.
        out_ref[...] = jnp.sum(picked, axis=0, keepdims=True)

    return kernel


def nll_loss_pallas(pred, target, trans_feat=None):
    """Equivalent of get_loss.forward(pred, target, trans_feat)."""
    del trans_feat  # unused by the reference module
    n, c = pred.shape
    if c > _LANES:
        # TODO(synk): num_classes > 128 would need a different lane packing;
        # the PointNet++ classifier head always has <= 128 classes.
        raise NotImplementedError("nll_loss_pallas supports num_classes <= 128")

    # Pad classes up to a power-of-two divisor of 128 (free reshape afterwards).
    c_pad = 1 << max(0, (c - 1).bit_length())
    groups = _LANES // c_pad
    n_pad = ((n + groups - 1) // groups) * groups

    if c_pad != c:
        pred = jnp.pad(pred, ((0, 0), (0, c_pad - c)))
    target = target.astype(jnp.int32)
    if n_pad != n:
        pred = jnp.pad(pred, ((0, n_pad - n), (0, 0)))     # zero rows contribute 0
        target = jnp.pad(target, (0, n_pad - n))

    rows = (n_pad * c_pad) // _LANES                        # == n_pad // groups
    pred_packed = pred.reshape(rows, _LANES)                # lane-dense view (free reshape)
    tgt_packed = target.reshape(rows, groups)

    tile_rows = rows if rows <= _MAX_TILE_ROWS else _MAX_TILE_ROWS
    num_tiles = pl.cdiv(rows, tile_rows)

    kernel = _make_nll_kernel(groups, c_pad, rows, tile_rows)

    itemsize = jnp.dtype(pred_packed.dtype).itemsize
    cost = pl.CostEstimate(
        flops=4 * rows * _LANES,
        transcendentals=0,
        bytes_accessed=rows * _LANES * itemsize + rows * groups * 4 + num_tiles * _LANES * 4,
    )

    partials = pl.pallas_call(
        kernel,
        out_shape=jax.ShapeDtypeStruct((num_tiles, _LANES), jnp.float32),
        grid_spec=pltpu.PrefetchScalarGridSpec(
            num_scalar_prefetch=0,
            grid=(num_tiles,),
            in_specs=[
                pl.BlockSpec((tile_rows, _LANES), lambda i: (i, 0)),
                pl.BlockSpec((tile_rows, groups), lambda i: (i, 0)),
            ],
            out_specs=pl.BlockSpec((1, _LANES), lambda i: (i, 0)),
        ),
        compiler_params=pltpu.CompilerParams(
            dimension_semantics=("parallel",),
        ),
        cost_estimate=cost,
    )(pred_packed, tgt_packed)

    # Tiny final reduction + mean in plain JAX.
    return -(jnp.sum(partials) / n)


if __name__ == "__main__":
    key = jax.random.PRNGKey(0)
    k1, k2, k3 = jax.random.split(key, 3)

    # ModelNet40-style classifier head: small batch, 40 classes.
    N, C = 32, 40
    logits = jax.random.normal(k1, (N, C), dtype=jnp.float32)
    pred = jax.nn.log_softmax(logits, axis=-1)          # log-probabilities
    target = jax.random.randint(k2, (N,), 0, C, dtype=jnp.int32)
    trans_feat = jax.random.normal(k3, (N, 3, 3), dtype=jnp.float32)  # unused by the loss

    loss = nll_loss_pallas(pred, target, trans_feat)
    loss = jax.block_until_ready(loss)

    # Cross-check against a plain-JAX reference of F.nll_loss (mean reduction).
    ref = -jnp.mean(pred[jnp.arange(N), target])
    assert jnp.allclose(loss, ref, atol=1e-5, rtol=1e-5), (loss, ref)

    print("KERNEL_OK")
</pallas_src>

<mosaic_0001>
module attributes {stable_mosaic.version = 11 : i64} {
  func.func @kernel(%arg0: i32, %arg1: memref<16x128xf32, #tpu.memory_space<vmem>>, %arg2: memref<16x2xi32, #tpu.memory_space<vmem>>, %arg3: memref<1x128xf32, #tpu.memory_space<vmem>>) attributes {dimension_semantics = [#tpu.dimension_semantics<parallel>], iteration_bounds = array<i64: 1>, scalar_prefetch = 0 : i64, scratch_operands = 0 : i64, tpu.core_type = #tpu.core_type<tc>, window_params = [{transform_indices = @transform_0, window_bounds = array<i64: 16, 128>}, {transform_indices = @transform_1, window_bounds = array<i64: 16, 2>}, {transform_indices = @transform_2, window_bounds = array<i64: 1, 128>}]} {
    %c0 = arith.constant 0 : index
    %c0_0 = arith.constant 0 : index
    %0 = vector.load %arg1[%c0, %c0_0] : memref<16x128xf32, #tpu.memory_space<vmem>>, vector<16x128xf32>
    %c0_1 = arith.constant 0 : index
    %c0_2 = arith.constant 0 : index
    %1 = vector.load %arg2[%c0_1, %c0_2] : memref<16x2xi32, #tpu.memory_space<vmem>>, vector<16x2xi32>
    %2 = tpu.iota {dimensions = array<i32: 1>} : vector<16x128xi32>
    %3 = vector.extract_strided_slice %1 {offsets = [0, 0], sizes = [16, 1], strides = [1, 1]} : vector<16x2xi32> to vector<16x1xi32>
    %4 = vector.broadcast %3 : vector<16x1xi32> to vector<16x128xi32>
    %5 = arith.cmpi eq, %2, %4 : vector<16x128xi32>
    %6 = vector.extract_strided_slice %1 {offsets = [0, 1], sizes = [16, 1], strides = [1, 1]} : vector<16x2xi32> to vector<16x1xi32>
    %c64_i32 = arith.constant 64 : i32
    %7 = vector.broadcast %c64_i32 : i32 to vector<16x1xi32>
    %8 = arith.addi %6, %7 : vector<16x1xi32>
    %9 = vector.broadcast %8 : vector<16x1xi32> to vector<16x128xi32>
    %10 = arith.cmpi eq, %2, %9 : vector<16x128xi32>
    %11 = arith.ori %5, %10 : vector<16x128xi1>
    %cst = arith.constant 0.000000e+00 : f32
    %12 = vector.broadcast %cst : f32 to vector<16x128xf32>
    %13 = arith.select %11, %0, %12 : vector<16x128xi1>, vector<16x128xf32>
    %cst_3 = arith.constant dense<0.000000e+00> : vector<128xf32>
    %14 = vector.multi_reduction <add>, %13, %cst_3 [0] : vector<16x128xf32> to vector<128xf32>
    %15 = vector.shape_cast %14 : vector<128xf32> to vector<1x128xf32>
    %c0_4 = arith.constant 0 : index
    %c0_5 = arith.constant 0 : index
    %16 = vector.load %arg3[%c0_4, %c0_5] : memref<1x128xf32, #tpu.memory_space<vmem>>, vector<1x128xf32>
    tpu.vector_store %arg3[%c0_4, %c0_5], %15 {strides = array<i32>} : memref<1x128xf32, #tpu.memory_space<vmem>>, vector<1x128xf32>,
    return
  }
  func.func @transform_0(%arg0: i32) -> (i32, i32) {
    %c0_i32 = arith.constant 0 : i32
    %c0_i32_0 = arith.constant 0 : i32
    return %arg0, %c0_i32 : i32, i32
  }
  func.func @transform_1(%arg0: i32) -> (i32, i32) {
    %c0_i32 = arith.constant 0 : i32
    %c0_i32_0 = arith.constant 0 : i32
    return %arg0, %c0_i32 : i32, i32
  }
  func.func @transform_2(%arg0: i32) -> (i32, i32) {
    %c0_i32 = arith.constant 0 : i32
    %c0_i32_0 = arith.constant 0 : i32
    return %arg0, %c0_i32 : i32, i32
  }
}

</mosaic_0001>

<llo_original>
// kernel: tpu_custom_call.1
$region0: #{tpu_custom_call.1}
  #allocation0 [shape = 'u32[]', space=smem, size = 0x4, offset = 0x4, fixed_abs, tag = 'smem constant byte address 0x4 - core index']
  #allocation1 [shape = 'u32[72,128]{1,0:T(1,128)}', space=vmem, size = 0x9000, scoped, tag = 'internal scratch']
  %s0 = inlined_call_operand.vmem [shape: f32[16,128], index: 0, kind: input, shape index: {}]
  %s1 = inlined_call_operand.vmem [shape: s32[16,2], index: 1, kind: input, shape index: {}]
  %s2 = inlined_call_operand.hbm [shape: f32[1,128], index: 2, kind: output, shape index: {}]
  %s3 = sld [smem:[#allocation0]]
  $region18: #{tpu_custom_call.1} parent=0
    _
  %s5 = ssub.s32 1, %s3
  %s6 = scalar_select 0, %s5, %s3
  $region1: #{tpu_custom_call.1} parent=0
    #allocation2 [shape = 'u8[512]{0}', space=vmem, size = 0x400, scoped, tag = 'output window, operand 0, single buffered']
    #allocation3 [shape = 's32[1]{0}', space=sflag, size = 0x4, scoped, tag = 'scoped memory for tpu_custom_call.1']
    %7 = vsyncpa [#allocation3], 0
    // Predicated region
    $region2: #{tpu_custom_call.1} parent=1 // pred_check
      _
    $region3: #{tpu_custom_call.1} parent=1 // pred_check_branch
      %9 = sbr.rel (0) target = $region5
    $region4: #{tpu_custom_call.1} parent=1 // pred_region
      _
    $region5: #{tpu_custom_call.1} parent=1 // pred_fallthru
      _
    // Predicated region
    $region6: #{tpu_custom_call.1} parent=1 // pred_check
      _
    $region7: #{tpu_custom_call.1} parent=1 // pred_check_branch
      %11 = sbr.rel (0) target = $region9
    $region8: #{tpu_custom_call.1} parent=1 // pred_region
      _
    $region9: #{tpu_custom_call.1} parent=1 // pred_fallthru
      _
    %v12 = vld [vmem:[%s0] sm:$0xff]
    %v13 = vld [vmem:[%s0 + $0x8] sm:$0xff]
    %v14 = vld [vmem:[%s1] sm:$0xff]
    %v15 = vld [vmem:[%s1 + $0x8] sm:$0xff]
    %v16 = vlaneseq
    %v17 = vand.u32 %v16, 127
    %18 = vset.pattern.permute.xlu0 0
    %19 = vperm.xlu0 %18, %v14
    %v20 = vpop.permute.xlu0 %19
    %21 = vset.pattern.permute.xlu0 0
    %22 = vperm.xlu0 %21, %v15
    %v23 = vpop.permute.xlu0 %22
    %vm24 = vcmp.eq.s32.totalorder %v17, %v20
    %vm25 = vcmp.eq.s32.totalorder %v17, %v23
    %v26 = vadd.s32 %v14, 64
    %v27 = vadd.s32 %v15, 64
    %28 = vset.pattern.permute.xlu0 1
    %29 = vperm.xlu0 %28, %v26
    %v30 = vpop.permute.xlu0 %29
    %31 = vset.pattern.permute.xlu0 1
    %32 = vperm.xlu0 %31, %v27
    %v33 = vpop.permute.xlu0 %32
    %vm34 = vcmp.eq.s32.totalorder %v17, %v30
    %vm35 = vcmp.eq.s32.totalorder %v17, %v33
    %vm36 = vmor %vm24, %vm34
    %vm37 = vmor %vm25, %vm35
    %v38 = vsel %vm36, %v12, 0.0
    %v39 = vsel %vm37, %v13, 0.0
    %v40 = vadd.f32 %v38, %v39
    %v41 = vrot.slane %v40, 4
    %v42 = vadd.f32 %v40, %v41
    %v43 = vrot.slane %v42, 2
    %v44 = vadd.f32 %v42, %v43
    %v45 = vrot.slane %v44, 1
    %v46 = vadd.f32 %v44, %v45
    %47 = vst [vmem:[#allocation2] sm:$0x1] %v46
    // Predicated region
    $region10: #{tpu_custom_call.1} parent=1 // pred_check
      _
    $region11: #{tpu_custom_call.1} parent=1 // pred_check_branch
      %49 = sbr.rel (0) target = $region13
    $region12: #{tpu_custom_call.1} parent=1 // pred_region
      %51 = vsyncadd [#allocation3], 0
      %s53 = sshll.u32 [#allocation2], 4
      %s54 = int_to_ptr.vmem [resolvable:$true] %s53
      %s55 = sshll.u32 %s2, 4
      %s56 = int_to_ptr.hbm [resolvable:$true] %s55
      %58 = dma.vmem_to_hbm [thread:$0]  %s54, 16, %s56, [#allocation3]
    $region13: #{tpu_custom_call.1} parent=1 // pred_fallthru
      _
    // Predicated region
    $region14: #{tpu_custom_call.1} parent=1 // pred_check
      _
    $region15: #{tpu_custom_call.1} parent=1 // pred_check_branch
      %60 = sbr.rel (0) target = $region17
    $region16: #{tpu_custom_call.1} parent=1 // pred_region
      %62 = dma.done [#allocation3], 16
    $region17: #{tpu_custom_call.1} parent=1 // pred_fallthru
      _
    %63 = vsyncpa [#allocation3], 1

</llo_original>
